<compile_context>
chip_gen: v7x
topology: tpu7x:2x2x1
jax: 0.10.0
libtpu: 0.0.40
codegen_flags: <defaults>
</compile_context>

<pallas_src>
import jax
import jax.numpy as jnp
from jax.experimental import pallas as pl
from jax.experimental.pallas import tpu as pltpu


def _round_up(x, m):
    return ((x + m - 1) // m) * m


def _make_nll_sum_kernel(valid_rows):
    """Accumulates sum_i [t_i matches lane class] * x[i, lane] into a resident (8, L) block."""

    def kernel(lane_ref, tgt_ref, inp_ref, out_ref):
        c = pl.program_id(0)
        i = pl.program_id(1)
        n_tiles = pl.num_programs(1)

        @pl.when(i == 0)
        def _():
            out_ref[...] = jnp.zeros_like(out_ref)

        x = inp_ref[...].astype(jnp.float32)       # (TM, L) log-probs, upcast in-register
        t = tgt_ref[...].astype(jnp.int32)         # (TM, L) folded int8 / (TM, 1) generic int32
        lane_cls = lane_ref[...]                   # (1, L) class index carried by each lane

        tm, lw = x.shape
        row0 = (c * n_tiles + i) * tm              # global (folded) row of this tile
        sub = jax.lax.broadcasted_iota(jnp.int32, (tm, lw), 0)
        in_range = sub < (valid_rows - row0)       # masks OOB tail rows and clamped revisit tiles

        # t == 0 was remapped to -1 in the wrapper -> weight-0 rows never match any lane class.
        mask = in_range & (lane_cls == t)
        picked = jnp.where(mask, x, 0.0)           # (TM, L); garbage/NaN tail rows select 0

        # VPU-only partial reduce: elementwise add of the stacked (8, L) vreg groups.
        partial = jnp.sum(picked.reshape(tm // 8, 8, lw), axis=0)   # (8, L)
        out_ref[...] += partial[None]

    return kernel


def sequence_criterion(inputs, targets, nc, *, tile_rows=None,
                       vmem_budget_bytes=20 * 1024 * 1024):
    """Returns scalar f32: sum_i -weight[t_i] * logp[i, t_i], weight=ones(nc), weight[0]=0."""
    total_sz = int(targets.size)
    if total_sz == 0:
        return jnp.float32(0.0)

    x = inputs.reshape(total_sz, -1)               # native dtype; no f32 copy in HBM
    assert x.shape[1] == nc
    t = targets.reshape(total_sz).astype(jnp.int32)
    t = jnp.where(t == 0, -1, t)                   # weight[0]=0 -> sentinel that never matches

    # Lane-dense folding: view (N, nc) as (N*nc/128, 128) when nc divides 128 (free reshape).
    fold = 128 // nc if (nc < 128 and 128 % nc == 0) else 1
    if fold > 1 and total_sz % fold == 0:
        lane_width = 128
        valid_rows = total_sz // fold
        x2 = x.reshape(valid_rows, lane_width)     # row-major contiguous reshape: no copy
        # int8 per-lane target replication: 4x less HBM than int32 (values in [-1, nc-1], nc<=64)
        t2 = jnp.broadcast_to(t.astype(jnp.int8)[:, None],
                              (total_sz, nc)).reshape(valid_rows, lane_width)
        lane_cls = (jnp.arange(lane_width, dtype=jnp.int32) % nc)[None, :]
        t_row_vmem = lane_width                    # int8, lane-dense
    else:
        fold = 1
        lane_width = nc
        valid_rows = total_sz
        x2 = x
        t2 = t.reshape(valid_rows, 1)
        lane_cls = jnp.arange(nc, dtype=jnp.int32)[None, :]
        t_row_vmem = 128 * 4                       # (TM, 1) int32 pads to 128 lanes in VMEM

    num_cores = 2 if valid_rows >= 64 else 1       # v7x megacore split; harmless loop on 1-TC chips
    x_bytes = jnp.dtype(x.dtype).itemsize
    x_row_vmem = _round_up(lane_width, 128) * x_bytes

    if tile_rows is None:
        by_vmem = vmem_budget_bytes // (2 * (x_row_vmem + t_row_vmem))   # 2x: double buffering
        tile_rows = min(8192, by_vmem, _round_up(-(-valid_rows // num_cores), 32))
        tile_rows = max(32, (tile_rows // 32) * 32)
    assert tile_rows % 32 == 0
    # TODO(synk): for huge vocabularies (nc in the 100k+ range) a scalar-prefetch variant that DMAs
    # only the 128-lane class block holding each row's target would cut HBM traffic by ~nc/128x.

    total_tiles = -(-valid_rows // tile_rows)
    n_tiles = -(-total_tiles // num_cores)
    max_blk = total_tiles - 1                      # clamp: no block ever starts out of range

    def row_map(c, i):
        return (jnp.minimum(c * n_tiles + i, max_blk), 0)

    out = pl.pallas_call(
        _make_nll_sum_kernel(valid_rows),
        out_shape=jax.ShapeDtypeStruct((num_cores, 8, lane_width), jnp.float32),
        grid_spec=pltpu.PrefetchScalarGridSpec(
            num_scalar_prefetch=0,
            grid=(num_cores, n_tiles),
            in_specs=[
                # lane -> class index map: tiny, same block for the whole grid (stays resident)
                pl.BlockSpec((1, lane_width), lambda c, i: (0, 0)),
                # targets tile
                pl.BlockSpec((tile_rows, t2.shape[1]), row_map),
                # log-prob tile
                pl.BlockSpec((tile_rows, lane_width), row_map),
            ],
            # per-core resident accumulator block; written back once per core
            out_specs=pl.BlockSpec((1, 8, lane_width), lambda c, i: (c, 0, 0)),
        ),
        compiler_params=pltpu.CompilerParams(
            dimension_semantics=("parallel", "arbitrary"),
            vmem_limit_bytes=48 * 1024 * 1024,
        ),
    )(lane_cls, t2, x2)

    # Final cross-lane/cross-sublane reduce + the single negation happen once, outside the kernel.
    return -jnp.sum(out)


def _reference(inputs, targets, nc):
    x = inputs.reshape(-1, nc).astype(jnp.float32)
    t = targets.reshape(-1)
    w = jnp.ones((nc,), jnp.float32).at[0].set(0.0)
    picked = jnp.take_along_axis(x, t[:, None], axis=1)[:, 0]
    return jnp.sum(-w[t] * picked)


if __name__ == "__main__":
    key = jax.random.PRNGKey(0)
    batch, seq, nc = 2, 8, 8          # total_sz = 16 rows, 8 classes

    k1, k2 = jax.random.split(key)
    logits = jax.random.normal(k1, (batch, seq, nc), jnp.float32)
    log_probs = jax.nn.log_softmax(logits, axis=-1)          # NLLLoss expects log-probs
    targets = jax.random.randint(k2, (batch, seq), 0, nc, jnp.int32)

    loss = sequence_criterion(log_probs, targets, nc)
    loss = jax.block_until_ready(loss)

    ref = _reference(log_probs, targets, nc)
    assert jnp.allclose(loss, ref, rtol=1e-5, atol=1e-5), (loss, ref)
    print("KERNEL_OK")
</pallas_src>

<mosaic_0001>
module attributes {stable_mosaic.version = 11 : i64} {
  func.func @kernel(%arg0: i32, %arg1: i32, %arg2: memref<1x128xi32, #tpu.memory_space<vmem>>, %arg3: memref<32x128xi8, #tpu.memory_space<vmem>>, %arg4: memref<32x128xf32, #tpu.memory_space<vmem>>, %arg5: memref<1x8x128xf32, #tpu.memory_space<vmem>>) attributes {dimension_semantics = [#tpu.dimension_semantics<parallel>, #tpu.dimension_semantics<arbitrary>], iteration_bounds = array<i64: 1, 1>, scalar_prefetch = 0 : i64, scratch_operands = 0 : i64, tpu.core_type = #tpu.core_type<tc>, window_params = [{pipeline_mode = #tpu.pipeline_mode<synchronous>, transform_indices = @transform_0, window_bounds = array<i64: 1, 128>}, {transform_indices = @transform_1, window_bounds = array<i64: 32, 128>}, {transform_indices = @transform_2, window_bounds = array<i64: 32, 128>}, {transform_indices = @transform_3, window_bounds = array<i64: 1, 8, 128>}]} {
    %c0_i32 = arith.constant 0 : i32
    %0 = arith.cmpi eq, %arg1, %c0_i32 : i32
    %1 = arith.extui %0 : i1 to i32
    %c0_i32_0 = arith.constant 0 : i32
    %2 = arith.cmpi ne, %1, %c0_i32_0 : i32
    scf.if %2 {
      %cst_14 = arith.constant 0.000000e+00 : f32
      %25 = vector.broadcast %cst_14 : f32 to vector<1x8x128xf32>
      %c0_15 = arith.constant 0 : index
      %c0_16 = arith.constant 0 : index
      %c0_17 = arith.constant 0 : index
      %26 = vector.load %arg5[%c0_15, %c0_16, %c0_17] : memref<1x8x128xf32, #tpu.memory_space<vmem>>, vector<1x8x128xf32>
      tpu.vector_store %arg5[%c0_15, %c0_16, %c0_17], %25 {strides = array<i32>} : memref<1x8x128xf32, #tpu.memory_space<vmem>>, vector<1x8x128xf32>,
    } else {
    }
    %c0 = arith.constant 0 : index
    %c0_1 = arith.constant 0 : index
    %3 = vector.load %arg4[%c0, %c0_1] : memref<32x128xf32, #tpu.memory_space<vmem>>, vector<32x128xf32>
    %c0_2 = arith.constant 0 : index
    %c0_3 = arith.constant 0 : index
    %4 = vector.load %arg3[%c0_2, %c0_3] : memref<32x128xi8, #tpu.memory_space<vmem>>, vector<32x128xi8>
    %5 = arith.extsi %4 : vector<32x128xi8> to vector<32x128xi32>
    %c0_4 = arith.constant 0 : index
    %c0_5 = arith.constant 0 : index
    %6 = vector.load %arg2[%c0_4, %c0_5] : memref<1x128xi32, #tpu.memory_space<vmem>>, vector<1x128xi32>
    %c1_i32 = arith.constant 1 : i32
    %7 = arith.muli %arg0, %c1_i32 : i32
    %8 = arith.addi %7, %arg1 : i32
    %c32_i32 = arith.constant 32 : i32
    %9 = arith.muli %8, %c32_i32 : i32
    %10 = tpu.iota {dimensions = array<i32: 0>} : vector<32x128xi32>
    %c1_i32_6 = arith.constant 1 : i32
    %11 = arith.subi %c1_i32_6, %9 : i32
    %12 = vector.broadcast %11 : i32 to vector<32x128xi32>
    %13 = arith.cmpi slt, %10, %12 : vector<32x128xi32>
    %14 = vector.broadcast %6 : vector<1x128xi32> to vector<32x128xi32>
    %15 = arith.cmpi eq, %14, %5 : vector<32x128xi32>
    %16 = arith.andi %13, %15 : vector<32x128xi1>
    %cst = arith.constant 0.000000e+00 : f32
    %17 = vector.broadcast %cst : f32 to vector<32x128xf32>
    %18 = arith.select %16, %3, %17 : vector<32x128xi1>, vector<32x128xf32>
    %19 = vector.shape_cast %18 : vector<32x128xf32> to vector<4x8x128xf32>
    %cst_7 = arith.constant dense<0.000000e+00> : vector<8x128xf32>
    %20 = vector.multi_reduction <add>, %19, %cst_7 [0] : vector<4x8x128xf32> to vector<8x128xf32>
    %c0_8 = arith.constant 0 : index
    %c0_9 = arith.constant 0 : index
    %c0_10 = arith.constant 0 : index
    %21 = vector.load %arg5[%c0_8, %c0_9, %c0_10] : memref<1x8x128xf32, #tpu.memory_space<vmem>>, vector<1x8x128xf32>
    %22 = vector.shape_cast %20 : vector<8x128xf32> to vector<1x8x128xf32>
    %23 = arith.addf %21, %22 : vector<1x8x128xf32>
    %c0_11 = arith.constant 0 : index
    %c0_12 = arith.constant 0 : index
    %c0_13 = arith.constant 0 : index
    %24 = vector.load %arg5[%c0_11, %c0_12, %c0_13] : memref<1x8x128xf32, #tpu.memory_space<vmem>>, vector<1x8x128xf32>
    tpu.vector_store %arg5[%c0_11, %c0_12, %c0_13], %23 {strides = array<i32>} : memref<1x8x128xf32, #tpu.memory_space<vmem>>, vector<1x8x128xf32>,
    return
  }
  func.func @transform_0(%arg0: i32, %arg1: i32) -> (i32, i32) {
    %c0_i32 = arith.constant 0 : i32
    %c0_i32_0 = arith.constant 0 : i32
    %c0_i32_1 = arith.constant 0 : i32
    return %c0_i32, %c0_i32_0 : i32, i32
  }
  func.func @transform_1(%arg0: i32, %arg1: i32) -> (i32, i32) {
    %c1_i32 = arith.constant 1 : i32
    %0 = arith.muli %arg0, %c1_i32 : i32
    %1 = arith.addi %0, %arg1 : i32
    %c0_i32 = arith.constant 0 : i32
    %2 = arith.minsi %1, %c0_i32 : i32
    %c0_i32_0 = arith.constant 0 : i32
    %c0_i32_1 = arith.constant 0 : i32
    return %2, %c0_i32_0 : i32, i32
  }
  func.func @transform_2(%arg0: i32, %arg1: i32) -> (i32, i32) {
    %c1_i32 = arith.constant 1 : i32
    %0 = arith.muli %arg0, %c1_i32 : i32
    %1 = arith.addi %0, %arg1 : i32
    %c0_i32 = arith.constant 0 : i32
    %2 = arith.minsi %1, %c0_i32 : i32
    %c0_i32_0 = arith.constant 0 : i32
    %c0_i32_1 = arith.constant 0 : i32
    return %2, %c0_i32_0 : i32, i32
  }
  func.func @transform_3(%arg0: i32, %arg1: i32) -> (i32, i32, i32) {
    %c0_i32 = arith.constant 0 : i32
    %c0_i32_0 = arith.constant 0 : i32
    %c0_i32_1 = arith.constant 0 : i32
    return %arg0, %c0_i32, %c0_i32_0 : i32, i32, i32
  }
}

</mosaic_0001>

<llo_original>
// kernel: tpu_custom_call.1
$region0: #{tpu_custom_call.1}
  #allocation0 [shape = 'u32[]', space=smem, size = 0x4, offset = 0x4, fixed_abs, tag = 'smem constant byte address 0x4 - core index']
  #allocation1 [shape = 'u32[144,128]{1,0:T(1,128)}', space=vmem, size = 0x12000, scoped, tag = 'internal scratch']
  %s0 = inlined_call_operand.hbm [shape: s32[1,128], index: 0, kind: input, shape index: {}]
  %s1 = inlined_call_operand.vmem [shape: s8[1,128], index: 1, kind: input, shape index: {}]
  %s2 = inlined_call_operand.vmem [shape: f32[1,128], index: 2, kind: input, shape index: {}]
  %s3 = inlined_call_operand.hbm [shape: f32[1,8,128], index: 3, kind: output, shape index: {}]
  %s4 = sld [smem:[#allocation0]]
  $region30: #{tpu_custom_call.1} parent=0
    _
  %s6 = ssub.s32 1, %s4
  %s7 = scalar_select 0, %s6, %s4
  $region1: #{tpu_custom_call.1} parent=0
    #allocation2 [shape = 'u8[512]{0}', space=vmem, size = 0x400, scoped, tag = 'input window, operand 0, single buffered']
    #allocation3 [shape = 's32[1]{0}', space=sflag, size = 0x4, scoped, tag = 'scoped memory for tpu_custom_call.1']
    #allocation4 [shape = 's32[1]{0}', space=sflag, size = 0x4, scoped, tag = 'scoped memory for tpu_custom_call.1']
    #allocation5 [shape = 'u8[4096]{0}', space=vmem, size = 0x1000, scoped, tag = 'output window, operand 0, single buffered']
    %8 = vsyncpa [#allocation3], 0
    %9 = vsyncpa [#allocation4], 0
    // Predicated region
    $region2: #{tpu_custom_call.1} parent=1 // pred_check
      _
    $region3: #{tpu_custom_call.1} parent=1 // pred_check_branch
      %11 = sbr.rel (0) target = $region5
    $region4: #{tpu_custom_call.1} parent=1 // pred_region
      %s13 = ssub.s32 16, 16
      %14 = vsyncadd [#allocation3], %s13
      %s16 = sshll.u32 [#allocation2], 4
      %s17 = int_to_ptr.vmem [resolvable:$true] %s16
      %19 = dma.hbm_to_vmem [thread:$0]  %s0, 16, %s17, [#allocation3]
    $region5: #{tpu_custom_call.1} parent=1 // pred_fallthru
      _
    // Predicated region
    $region6: #{tpu_custom_call.1} parent=1 // pred_check
      _
    $region7: #{tpu_custom_call.1} parent=1 // pred_check_branch
      %21 = sbr.rel (0) target = $region9
    $region8: #{tpu_custom_call.1} parent=1 // pred_region
      %s22 = sadd.s32 0, 0
      %p23 = scmp.lt.s32.totalorder %s22, 0
      %s24 = scalar_select %p23, %s22, 0
      %s25 = smul.u32 8, %s24
      %s26 = ssub.s32 1, %s25
      %s27 = smul.u32 16, %s26
      %p28 = scmp.lt.s32.totalorder %s25, 0
      %s29 = scalar_select %p28, %s25, 0
      %s30 = scalar_lea.vmem %s1, %s29
      %s31 = sadd.s32 0, 0
      %p32 = scmp.lt.s32.totalorder %s31, 0
      %s33 = scalar_select %p32, %s31, 0
      %s34 = smul.u32 8, %s33
      %s35 = ssub.s32 1, %s34
      %s36 = smul.u32 16, %s35
    $region9: #{tpu_custom_call.1} parent=1 // pred_fallthru
      _
    // Predicated region
    $region10: #{tpu_custom_call.1} parent=1 // pred_check
      _
    $region11: #{tpu_custom_call.1} parent=1 // pred_check_branch
      %38 = sbr.rel (0) target = $region13
    $region12: #{tpu_custom_call.1} parent=1 // pred_region
      %s39 = sadd.s32 0, 0
      %p40 = scmp.lt.s32.totalorder %s39, 0
      %s41 = scalar_select %p40, %s39, 0
      %s42 = smul.u32 32, %s41
      %s43 = ssub.s32 1, %s42
      %s44 = smul.u32 16, %s43
      %p45 = scmp.lt.s32.totalorder %s42, 0
      %s46 = scalar_select %p45, %s42, 0
      %s47 = scalar_lea.vmem %s2, %s46
      %s48 = sadd.s32 0, 0
      %p49 = scmp.lt.s32.totalorder %s48, 0
      %s50 = scalar_select %p49, %s48, 0
      %s51 = smul.u32 32, %s50
      %s52 = ssub.s32 1, %s51
      %s53 = smul.u32 16, %s52
    $region13: #{tpu_custom_call.1} parent=1 // pred_fallthru
      _
    // Predicated region
    $region14: #{tpu_custom_call.1} parent=1 // pred_check
      _
    $region15: #{tpu_custom_call.1} parent=1 // pred_check_branch
      %55 = sbr.rel (0) target = $region17
    $region16: #{tpu_custom_call.1} parent=1 // pred_region
      %56 = dma.done [#allocation3], 16
    $region17: #{tpu_custom_call.1} parent=1 // pred_fallthru
      _
    %s57 = sadd.s32 0, 0
    %p58 = scmp.lt.s32.totalorder %s57, 0
    %s59 = scalar_select %p58, %s57, 0
    %s60 = smul.u32 8, %s59
    %s61 = ssub.s32 1, %s60
    %s62 = smul.u32 16, %s61
    %p63 = scmp.lt.s32.totalorder %s60, 0
    %s64 = scalar_select %p63, %s60, 0
    %s65 = scalar_lea.vmem %s1, %s64
    %s66 = sadd.s32 0, 0
    %p67 = scmp.lt.s32.totalorder %s66, 0
    %s68 = scalar_select %p67, %s66, 0
    %s69 = smul.u32 32, %s68
    %s70 = ssub.s32 1, %s69
    %s71 = smul.u32 16, %s70
    %p72 = scmp.lt.s32.totalorder %s69, 0
    %s73 = scalar_select %p72, %s69, 0
    %s74 = scalar_lea.vmem %s2, %s73
    %s75 = sadd.s32 0, 0
    %p76 = scmp.lt.s32.totalorder %s75, 0
    %s77 = scalar_select %p76, %s75, 0
    %s78 = smul.u32 8, %s77
    %s79 = ssub.s32 1, %s78
    %s80 = smul.u32 16, %s79
    %p81 = scmp.lt.s32.totalorder %s78, 0
    %s82 = scalar_select %p81, %s78, 0
    %s83 = scalar_lea.vmem %s1, %s82
    %s84 = sadd.s32 0, 0
    %p85 = scmp.lt.s32.totalorder %s84, 0
    %s86 = scalar_select %p85, %s84, 0
    %s87 = smul.u32 8, %s86
    %s88 = ssub.s32 1, %s87
    %s89 = smul.u32 16, %s88
    %s90 = sadd.s32 0, 0
    %p91 = scmp.lt.s32.totalorder %s90, 0
    %s92 = scalar_select %p91, %s90, 0
    %s93 = smul.u32 32, %s92
    %s94 = ssub.s32 1, %s93
    %s95 = smul.u32 16, %s94
    %p96 = scmp.lt.s32.totalorder %s93, 0
    %s97 = scalar_select %p96, %s93, 0
    %s98 = scalar_lea.vmem %s2, %s97
    %s99 = sadd.s32 0, 0
    %p100 = scmp.lt.s32.totalorder %s99, 0
    %s101 = scalar_select %p100, %s99, 0
    %s102 = smul.u32 32, %s101
    %s103 = ssub.s32 1, %s102
    %s104 = smul.u32 16, %s103
    %p105 = scmp.eq.s32.totalorder 0, 0
    // Predicated region
    $region18: #{tpu_custom_call.1} parent=1 // pred_check
      %p106 = pneg %p105
    $region19: #{tpu_custom_call.1} parent=1 // pred_check_branch
      %108 = sbr.rel (%p106) target = $region21
    $region20: #{tpu_custom_call.1} parent=1 // pred_region
      %109 = vst [vmem:[#allocation5] sm:$0xff] 0.0
    $region21: #{tpu_custom_call.1} parent=1 // pred_fallthru
      _
    %v110 = vld [vmem:[%s98] sm:$0xff]
    %v111 = vld [vmem:[%s98 + $0x8] sm:$0xff]
    %v112 = vld [vmem:[%s98 + $0x10] sm:$0xff]
    %v113 = vld [vmem:[%s98 + $0x18] sm:$0xff]
    %v114 = vld [vmem:[%s83] sm:$0x1]
    %v115 = vld [vmem:[%s83 + $0x1] sm:$0x1]
    %v116 = vld [vmem:[%s83 + $0x2] sm:$0x1]
    %v117 = vld [vmem:[%s83 + $0x3] sm:$0x1]
    %v118 = vld [vmem:[%s83 + $0x4] sm:$0x1]
    %v119 = vld [vmem:[%s83 + $0x5] sm:$0x1]
    %v120 = vld [vmem:[%s83 + $0x6] sm:$0x1]
    %v121 = vld [vmem:[%s83 + $0x7] sm:$0x1]
    %v122 = vunpack.c.0.s8 %v114
    %v123 = vunpack.c.0.s8 %v115
    %v124 = vunpack.c.0.s8 %v116
    %v125 = vunpack.c.0.s8 %v117
    %v126 = vunpack.c.0.s8 %v118
    %v127 = vunpack.c.0.s8 %v119
    %v128 = vunpack.c.0.s8 %v120
    %v129 = vunpack.c.0.s8 %v121
    %v130 = vld [vmem:[#allocation2] sm:$0x1]
    %s131 = sadd.s32 0, 0
    %s132 = smul.u32 %s131, 32
    %v133 = vlaneseq
    %v134 = vshrl.u32 %v133, 7
    %v135 = vadd.s32 %v134, 8
    %v136 = vadd.s32 %v134, 16
    %v137 = vadd.s32 %v134, 24
    %s138 = ssub.s32 1, %s132
    %v139 = vstv %s138
    %vm140 = vcmp.lt.s32.totalorder %v134, %v139
    %vm141 = vcmp.lt.s32.totalorder %v135, %v139
    %vm142 = vcmp.lt.s32.totalorder %v136, %v139
    %vm143 = vcmp.lt.s32.totalorder %v137, %v139
    %v144 = vlaneseq
    %v145 = vshrl.u32 %v144, 7
    %v146 = vsub.s32 0, %v145
    %v147 = vrot.slane %v130, %v146
    %v148 = vcombine.low %v122, %v123
    %v149 = vcombine.low %v124, %v125
    %v150 = vcombine.low %v126, %v127
    %v151 = vcombine.low %v128, %v129
    %vm152 = vcmp.eq.s32.totalorder %v147, %v148
    %vm153 = vcmp.eq.s32.totalorder %v147, %v149
    %vm154 = vcmp.eq.s32.totalorder %v147, %v150
    %vm155 = vcmp.eq.s32.totalorder %v147, %v151
    %vm156 = vmand %vm140, %vm152
    %vm157 = vmand %vm141, %vm153
    %vm158 = vmand %vm142, %vm154
    %vm159 = vmand %vm143, %vm155
    %v160 = vsel %vm156, %v110, 0.0
    %v161 = vsel %vm157, %v111, 0.0
    %v162 = vsel %vm158, %v112, 0.0
    %v163 = vsel %vm159, %v113, 0.0
    %v164 = vadd.f32 %v160, %v161
    %v165 = vadd.f32 %v164, %v162
    %v166 = vadd.f32 %v165, %v163
    %v167 = vld [vmem:[#allocation5] sm:$0xff]
    %v168 = vadd.f32 %v167, %v166
    %169 = vst [vmem:[#allocation5] sm:$0xff] %v168
    // Predicated region
    $region22: #{tpu_custom_call.1} parent=1 // pred_check
      _
    $region23: #{tpu_custom_call.1} parent=1 // pred_check_branch
      %171 = sbr.rel (0) target = $region25
    $region24: #{tpu_custom_call.1} parent=1 // pred_region
      %s173 = ssub.s32 128, 128
      %174 = vsyncadd [#allocation4], %s173
      %s176 = sshll.u32 [#allocation5], 4
      %s177 = int_to_ptr.vmem [resolvable:$true] %s176
      %179 = dma.vmem_to_hbm [thread:$0]  %s177, 128, %s3, [#allocation4]
    $region25: #{tpu_custom_call.1} parent=1 // pred_fallthru
      _
    // Predicated region
    $region26: #{tpu_custom_call.1} parent=1 // pred_check
      _
    $region27: #{tpu_custom_call.1} parent=1 // pred_check_branch
      %181 = sbr.rel (0) target = $region29
    $region28: #{tpu_custom_call.1} parent=1 // pred_region
      %182 = dma.done [#allocation4], 128
    $region29: #{tpu_custom_call.1} parent=1 // pred_fallthru
      _
    %183 = vsyncpa [#allocation3], 1
    %184 = vsyncpa [#allocation4], 1

</llo_original>
